<compile_context>
chip_gen: v6e
topology: v6e:2x2x1
jax: 0.10.0
libtpu: 0.0.40
codegen_flags: <defaults>
</compile_context>

<pallas_src>
import jax
import jax.numpy as jnp
from jax import lax
from jax.experimental import pallas as pl
from jax.experimental.pallas import tpu as pltpu


def _round_up(n, m):
    return ((n + m - 1) // m) * m


def _stage1_kernel(x_ref, w_ref, b_ref, o_ref):
    # x_ref: (TB, IN)   w_ref: (OUT, IN)   b_ref: (1, OUT)   o_ref: (TB, OUT)
    acc = lax.dot_general(
        x_ref[...], w_ref[...],
        dimension_numbers=(((1,), (1,)), ((), ())),   # x @ W^T, no wrapper transpose
        preferred_element_type=jnp.float32)
    acc = acc + b_ref[...]                            # broadcast (1, OUT) over batch
    o_ref[...] = jnp.maximum(acc, 0.0).astype(o_ref.dtype)


def stage1_forward(x, weight, bias):
    """Stage1 forward: relu(x @ weight.T + bias).

    x:      (B, 10)  f32
    weight: (20, 10) f32 (PyTorch nn.Linear layout, NOT transposed)
    bias:   (20,)    f32
    returns (B, 20)  f32
    """
    B, IN = x.shape
    OUT = weight.shape[0]
    b_row = bias.reshape(1, OUT)

    if B <= 512:
        # Native module regime (8x10x20): one block, pure fixed overhead anyway.
        tb = B
    else:
        # Streaming regime: multiple of 128, >=512 rows/tile to amortize the
        # ~0.35us per-step overhead, aim for >=4 grid steps (v7x megacore),
        # cap at 8192 so double-buffered padded tiles stay modest in VMEM.
        tb = min(8192, max(512, _round_up(pl.cdiv(B, 4), 128)))

    grid = (pl.cdiv(B, tb),)

    # Padded (lane dim -> 128), double-buffered VMEM for the streamed tiles,
    # plus headroom for the resident weight/bias and compiler scratch.
    x_tile_bytes = tb * _round_up(IN, 128) * 4
    o_tile_bytes = tb * _round_up(OUT, 128) * 4
    vmem_bytes = 2 * (x_tile_bytes + o_tile_bytes) + (2 << 20)
    vmem_bytes = int(max(vmem_bytes, 4 << 20))

    return pl.pallas_call(
        _stage1_kernel,
        out_shape=jax.ShapeDtypeStruct((B, OUT), jnp.float32),
        grid=grid,
        in_specs=[
            pl.BlockSpec((tb, IN), lambda i: (i, 0)),     # stream x batch tiles
            pl.BlockSpec((OUT, IN), lambda i: (0, 0)),    # weight: VMEM-resident
            pl.BlockSpec((1, OUT), lambda i: (0, 0)),     # bias:   VMEM-resident
        ],
        out_specs=pl.BlockSpec((tb, OUT), lambda i: (i, 0)),
        compiler_params=pltpu.CompilerParams(
            dimension_semantics=("parallel",),            # 2 TCs on v7x
            vmem_limit_bytes=vmem_bytes,
        ),
    )(x, weight, b_row)


if __name__ == "__main__":
    key = jax.random.PRNGKey(0)
    kx, kw, kb, kbig = jax.random.split(key, 4)

    B, IN, OUT = 8, 10, 20

    # Deterministic input (mirrors torch.randn(8, 10))
    x = jax.random.normal(kx, (B, IN), dtype=jnp.float32)

    # nn.Linear default init: U(-1/sqrt(in_features), 1/sqrt(in_features))
    bound = 1.0 / (IN ** 0.5)
    weight = jax.random.uniform(kw, (OUT, IN), minval=-bound, maxval=bound,
                                dtype=jnp.float32)
    bias = jax.random.uniform(kb, (OUT,), minval=-bound, maxval=bound,
                              dtype=jnp.float32)

    # --- module-spec shape (B=8): single-block path ---
    out = jax.block_until_ready(stage1_forward(x, weight, bias))
    ref = jnp.maximum(x @ weight.T + bias, 0.0)
    assert out.shape == (B, OUT)
    assert jnp.allclose(out, ref, atol=1e-5, rtol=1e-5)

    # --- larger, ragged batch: exercises the streaming path (grid over B,
    #     partial last tile -> OOB rows masked on writeback) ---
    B_big = 1300
    x_big = jax.random.normal(kbig, (B_big, IN), dtype=jnp.float32)
    out_big = jax.block_until_ready(stage1_forward(x_big, weight, bias))
    ref_big = jnp.maximum(x_big @ weight.T + bias, 0.0)
    assert out_big.shape == (B_big, OUT)
    assert jnp.allclose(out_big, ref_big, atol=1e-5, rtol=1e-5)

    print("KERNEL_OK")
</pallas_src>

<mosaic_0001>
module attributes {stable_mosaic.version = 11 : i64} {
  func.func @_stage1_kernel(%arg0: i32, %arg1: memref<8x10xf32, #tpu.memory_space<vmem>>, %arg2: memref<20x10xf32, #tpu.memory_space<vmem>>, %arg3: memref<1x20xf32, #tpu.memory_space<vmem>>, %arg4: memref<8x20xf32, #tpu.memory_space<vmem>>) attributes {dimension_semantics = [#tpu.dimension_semantics<parallel>], iteration_bounds = array<i64: 1>, scalar_prefetch = 0 : i64, scratch_operands = 0 : i64, tpu.core_type = #tpu.core_type<tc>, window_params = [{transform_indices = @transform_0, window_bounds = array<i64: 8, 10>}, {pipeline_mode = #tpu.pipeline_mode<synchronous>, transform_indices = @transform_1, window_bounds = array<i64: 20, 10>}, {pipeline_mode = #tpu.pipeline_mode<synchronous>, transform_indices = @transform_2, window_bounds = array<i64: 1, 20>}, {transform_indices = @transform_3, window_bounds = array<i64: 8, 20>}]} {
    %c0 = arith.constant 0 : index
    %c0_0 = arith.constant 0 : index
    %0 = vector.load %arg1[%c0, %c0_0] : memref<8x10xf32, #tpu.memory_space<vmem>>, vector<8x10xf32>
    %c0_1 = arith.constant 0 : index
    %c0_2 = arith.constant 0 : index
    %1 = vector.load %arg2[%c0_1, %c0_2] : memref<20x10xf32, #tpu.memory_space<vmem>>, vector<20x10xf32>
    %cst = arith.constant dense<0.000000e+00> : vector<8x20xf32>
    %2 = tpu.matmul %0, %1, %cst {dimension_numbers = #tpu.dot_dimension_numbers<[1], [1], [0], [0], [0, 0, 1, 0], [], []>} : vector<8x10xf32>, vector<20x10xf32>, vector<8x20xf32> -> vector<8x20xf32>
    %c0_3 = arith.constant 0 : index
    %c0_4 = arith.constant 0 : index
    %3 = vector.load %arg3[%c0_3, %c0_4] : memref<1x20xf32, #tpu.memory_space<vmem>>, vector<1x20xf32>
    %4 = vector.broadcast %3 : vector<1x20xf32> to vector<8x20xf32>
    %5 = arith.addf %2, %4 : vector<8x20xf32>
    %cst_5 = arith.constant 0.000000e+00 : f32
    %6 = vector.broadcast %cst_5 : f32 to vector<8x20xf32>
    %7 = arith.maximumf %5, %6 : vector<8x20xf32>
    %c0_6 = arith.constant 0 : index
    %c0_7 = arith.constant 0 : index
    %8 = vector.load %arg4[%c0_6, %c0_7] : memref<8x20xf32, #tpu.memory_space<vmem>>, vector<8x20xf32>
    tpu.vector_store %arg4[%c0_6, %c0_7], %7 {strides = array<i32>} : memref<8x20xf32, #tpu.memory_space<vmem>>, vector<8x20xf32>,
    return
  }
  func.func @transform_0(%arg0: i32) -> (i32, i32) {
    %c0_i32 = arith.constant 0 : i32
    %c0_i32_0 = arith.constant 0 : i32
    return %arg0, %c0_i32 : i32, i32
  }
  func.func @transform_1(%arg0: i32) -> (i32, i32) {
    %c0_i32 = arith.constant 0 : i32
    %c0_i32_0 = arith.constant 0 : i32
    %c0_i32_1 = arith.constant 0 : i32
    return %c0_i32, %c0_i32_0 : i32, i32
  }
  func.func @transform_2(%arg0: i32) -> (i32, i32) {
    %c0_i32 = arith.constant 0 : i32
    %c0_i32_0 = arith.constant 0 : i32
    %c0_i32_1 = arith.constant 0 : i32
    return %c0_i32, %c0_i32_0 : i32, i32
  }
  func.func @transform_3(%arg0: i32) -> (i32, i32) {
    %c0_i32 = arith.constant 0 : i32
    %c0_i32_0 = arith.constant 0 : i32
    return %arg0, %c0_i32 : i32, i32
  }
}

</mosaic_0001>

<llo_original>
// kernel: tpu_custom_call.1
$region0: #{tpu_custom_call.1}
  #allocation0 [shape = 'u32[]', space=smem, size = 0x4, offset = 0x4, fixed_abs, tag = 'smem constant byte address 0x4 - core index']
  #allocation1 [shape = 'u32[144,128]{1,0:T(1,128)}', space=vmem, size = 0x12000, scoped, tag = 'internal scratch']
  %s0 = inlined_call_operand.vmem [shape: f32[8,10], index: 0, kind: input, shape index: {}]
  %s1 = inlined_call_operand.vmem [shape: f32[20,10], index: 1, kind: input, shape index: {}]
  %s2 = inlined_call_operand.vmem [shape: f32[1,20], index: 2, kind: input, shape index: {}]
  %s3 = inlined_call_operand.hbm [shape: f32[8,20], index: 3, kind: output, shape index: {}]
  %s4 = sld [smem:[#allocation0]]
  $region22: #{tpu_custom_call.1} parent=0
    _
  %s6 = ssub.s32 1, %s4
  %s7 = scalar_select 0, %s6, %s4
  $region1: #{tpu_custom_call.1} parent=0
    #allocation2 [shape = 'u8[4096]{0}', space=vmem, size = 0x1000, scoped, tag = 'output window, operand 0, single buffered']
    #allocation3 [shape = 's32[1]{0}', space=sflag, size = 0x4, scoped, tag = 'scoped memory for tpu_custom_call.1']
    %8 = vsyncpa [#allocation3], 0
    // Predicated region
    $region2: #{tpu_custom_call.1} parent=1 // pred_check
      _
    $region3: #{tpu_custom_call.1} parent=1 // pred_check_branch
      %10 = sbr.rel (0) target = $region5
    $region4: #{tpu_custom_call.1} parent=1 // pred_region
      _
    $region5: #{tpu_custom_call.1} parent=1 // pred_fallthru
      _
    // Predicated region
    $region6: #{tpu_custom_call.1} parent=1 // pred_check
      _
    $region7: #{tpu_custom_call.1} parent=1 // pred_check_branch
      %12 = sbr.rel (0) target = $region9
    $region8: #{tpu_custom_call.1} parent=1 // pred_region
      _
    $region9: #{tpu_custom_call.1} parent=1 // pred_fallthru
      _
    // Predicated region
    $region10: #{tpu_custom_call.1} parent=1 // pred_check
      _
    $region11: #{tpu_custom_call.1} parent=1 // pred_check_branch
      %14 = sbr.rel (0) target = $region13
    $region12: #{tpu_custom_call.1} parent=1 // pred_region
      _
    $region13: #{tpu_custom_call.1} parent=1 // pred_fallthru
      _
    %v15 = vld [vmem:[%s0] sm:$0xff]
    %v16 = vld [vmem:[%s1] sm:$0xff]
    %v17 = vld [vmem:[%s1 + $0x8] sm:$0xff]
    %v18 = vld [vmem:[%s1 + $0x10] sm:$0xf]
    %v19 = vld [vmem:[%s2] sm:$0x1]
    %v21 = vlaneseq
    %v22 = vshrl.u32 %v21, 7
    %v23 = vsub.s32 0, %v22
    %v24 = vrot.slane %v19, %v23
    %vm26 = vcmask 80896
    %v28 = vsel %vm26, %v15, 0
    %v31 = vsel %vm26, %v16, 0
    %v34 = vsel %vm26, %v17, 0
    %v37 = vsel %vm26, %v18, 0
    %39 = vmatprep.subr.mxu0 0.0
    %40 = vmatpush1.xpose.msra.mxu0 0.0
    %41 = vmatprep.subr.mxu0 0.0
    %42 = vmatpush1.xpose.msra.mxu0 0.0
    %43 = vmatprep.subr.mxu0 0.0
    %44 = vmatpush1.xpose.msra.mxu0 0.0
    %45 = vmatprep.subr.mxu0 0.0
    %46 = vmatpush1.xpose.msra.mxu0 0.0
    %47 = vmatprep.subr.mxu0 0.0
    %48 = vmatpush1.xpose.msra.mxu0 0.0
    %49 = vmatprep.subr.mxu0 0.0
    %50 = vmatpush1.xpose.msra.mxu0 0.0
    %51 = vmatprep.subr.mxu0 0.0
    %52 = vmatpush1.xpose.msra.mxu0 0.0
    %53 = vmatprep.subr.mxu0 0.0
    %54 = vmatpush1.xpose.msra.mxu0 0.0
    %55 = vmatprep.subr.mxu0 0.0
    %56 = vmatpush1.xpose.msra.mxu0 0.0
    %57 = vmatprep.subr.mxu0 0.0
    %58 = vmatpush1.xpose.msra.mxu0 0.0
    %59 = vmatprep.subr.mxu0 0.0
    %60 = vmatpush1.xpose.msra.mxu0 0.0
    %61 = vmatprep.subr.mxu0 0.0
    %62 = vmatpush1.xpose.msra.mxu0 0.0
    %63 = vmatprep.subr.mxu0 0.0
    %64 = vmatpush1.xpose.msra.mxu0 0.0
    %65 = vmatprep.subr.mxu0 0.0
    %66 = vmatpush1.xpose.msra.mxu0 %v37
    %67 = vmatprep.subr.mxu0 0.0
    %68 = vmatpush1.xpose.msra.mxu0 %v34
    %69 = vmatprep.subr.mxu0 0.0
    %70 = vmatpush1.xpose.msra.mxu0 %v31
    %71 = vmatprep.subr.mxu0 0.0
    %72 = vmatpush2.xpose.msra.mxu0 0.0
    %73 = vmatprep.subr.mxu0 0.0
    %74 = vmatpush2.xpose.msra.mxu0 0.0
    %75 = vmatprep.subr.mxu0 0.0
    %76 = vmatpush2.xpose.msra.mxu0 0.0
    %77 = vmatprep.subr.mxu0 0.0
    %78 = vmatpush2.xpose.msra.mxu0 0.0
    %79 = vmatprep.subr.mxu0 0.0
    %80 = vmatpush2.xpose.msra.mxu0 0.0
    %81 = vmatprep.subr.mxu0 0.0
    %82 = vmatpush2.xpose.msra.mxu0 0.0
    %83 = vmatprep.subr.mxu0 0.0
    %84 = vmatpush2.xpose.msra.mxu0 0.0
    %85 = vmatprep.subr.mxu0 0.0
    %86 = vmatpush2.xpose.msra.mxu0 0.0
    %87 = vmatprep.subr.mxu0 0.0
    %88 = vmatpush2.xpose.msra.mxu0 0.0
    %89 = vmatprep.subr.mxu0 0.0
    %90 = vmatpush2.xpose.msra.mxu0 0.0
    %91 = vmatprep.subr.mxu0 0.0
    %92 = vmatpush2.xpose.msra.mxu0 0.0
    %93 = vmatprep.subr.mxu0 0.0
    %94 = vmatpush2.xpose.msra.mxu0 0.0
    %95 = vmatprep.subr.mxu0 0.0
    %96 = vmatpush2.xpose.msra.mxu0 0.0
    %97 = vmatprep.subr.mxu0 0.0
    %98 = vmatpush2.xpose.msra.mxu0 0.0
    %99 = vmatprep.subr.mxu0 0.0
    %100 = vmatpush2.xpose.msra.mxu0 0.0
    %101 = vmatprep.subr.mxu0 0.0
    %102 = vmatpush2.xpose.msra.mxu0 0.0
    %103 = vmatprep.mubr.f32.mxu0 0.0
    %104 = vmatmul.mubr.f32.gmra.mxu0 %v28
    %v105 = vpop.f32.mrf.mxu0
    %v106 = vadd.f32 %v24, %v105
    %v107 = vpop.f32.mrf.mxu0
    %108 = vdwg.mxu0
    %v109 = vmax.f32 %v106, 0.0
    %vm110 = vcmask 162816
    %111 = vst.msk [vmem:[#allocation2] sm:$0xff] %vm110, %v109
    // Predicated region
    $region14: #{tpu_custom_call.1} parent=1 // pred_check
      _
    $region15: #{tpu_custom_call.1} parent=1 // pred_check_branch
      %113 = sbr.rel (0) target = $region17
    $region16: #{tpu_custom_call.1} parent=1 // pred_region
      %s115 = ssub.s32 128, 128
      %116 = vsyncadd [#allocation3], %s115
      %s118 = sshll.u32 [#allocation2], 4
      %s119 = int_to_ptr.vmem [resolvable:$true] %s118
      %121 = dma.vmem_to_hbm [thread:$0]  %s119, 128, %s3, [#allocation3]
    $region17: #{tpu_custom_call.1} parent=1 // pred_fallthru
      _
    // Predicated region
    $region18: #{tpu_custom_call.1} parent=1 // pred_check
      _
    $region19: #{tpu_custom_call.1} parent=1 // pred_check_branch
      %123 = sbr.rel (0) target = $region21
    $region20: #{tpu_custom_call.1} parent=1 // pred_region
      %124 = dma.done [#allocation3], 128
    $region21: #{tpu_custom_call.1} parent=1 // pred_fallthru
      _
    %125 = vsyncpa [#allocation3], 1

</llo_original>
